<compile_context>
chip_gen: v6e
topology: v6e:2x2x1
jax: 0.10.0
libtpu: 0.0.40
codegen_flags: <defaults>
</compile_context>

<pallas_src>
import jax
import jax.numpy as jnp
from jax.experimental import pallas as pl
from jax.experimental.pallas import tpu as pltpu


# ----------------------------------------------------------------------------
# Pass 1: tiled global average pool (sum accumulation in f32)
# ----------------------------------------------------------------------------
def _pool_sum_kernel(u_ref, z_ref):
    # u_ref: (bc_tile, hw_tile) slab of the flattened input
    # z_ref: (bc_tile, 1) float32 accumulator, resident across the HW axis
    @pl.when(pl.program_id(1) == 0)
    def _():
        z_ref[...] = jnp.zeros_like(z_ref)

    z_ref[...] += jnp.sum(u_ref[...].astype(jnp.float32), axis=-1,
                          keepdims=True)


# ----------------------------------------------------------------------------
# Pass 3: streaming gate multiply (stays in the input dtype)
# ----------------------------------------------------------------------------
def _gate_mul_kernel(u_ref, g_ref, o_ref):
    # u_ref / o_ref: (bc_tile, hw_tile);  g_ref: (bc_tile, 1) in u's dtype
    o_ref[...] = u_ref[...] * g_ref[...]


def _pick_tile(n, quantum, cap):
    """Largest multiple of `quantum` that divides n and is <= cap.

    Falls back to the full extent `n` when no such divisor exists (full-extent
    blocks are always legal on TPU).
    """
    cap = min(cap, n)
    if cap < quantum:
        return n
    cap = (cap // quantum) * quantum
    t = cap
    while t >= quantum:
        if n % t == 0:
            return t
        t -= quantum
    return n


@jax.jit
def cse_forward(u_nchw, w_squeeze, w_excite):
    """u_nchw: (B, C, H, W); w_squeeze: (C//2, C); w_excite: (C, C//2)."""
    B, C, H, W = u_nchw.shape
    HW = H * W
    BC = B * C
    dt = u_nchw.dtype
    itemsize = jnp.dtype(dt).itemsize
    u_flat = u_nchw.reshape(BC, HW)

    # Conservative per-call block budget so double-buffered copies fit the
    # default scoped VMEM limit on every generation (v5e is tightest: 16 MiB).
    vmem_budget = 8 * 1024 * 1024

    # Sublane tile over the fused (B*C) axis.
    bc_tile = _pick_tile(BC, quantum=8, cap=1024)

    # ---------------- Pass 1: pooled channel sums (B*C, 1) in f32 ------------
    pool_cap = max(128, vmem_budget // max(1, 2 * bc_tile * itemsize))
    pool_tile = _pick_tile(HW, quantum=128, cap=min(2048, pool_cap))
    n_bc = BC // bc_tile
    n_pool = HW // pool_tile

    z_sums = pl.pallas_call(
        _pool_sum_kernel,
        out_shape=jax.ShapeDtypeStruct((BC, 1), jnp.float32),
        grid=(n_bc, n_pool),
        in_specs=[pl.BlockSpec((bc_tile, pool_tile), lambda b, h: (b, h))],
        out_specs=pl.BlockSpec((bc_tile, 1), lambda b, h: (b, 0)),
        compiler_params=pltpu.CompilerParams(
            dimension_semantics=("parallel", "arbitrary")),
        cost_estimate=pl.CostEstimate(
            flops=BC * HW,
            transcendentals=0,
            bytes_accessed=BC * HW * itemsize + BC * 4),
    )(u_flat)

    # ------- Pass 2: squeeze / excite as two tiny GEMMs + sigmoid ------------
    # Fold 1/HW of the mean into the squeeze weight (sums -> mean for free).
    w1 = w_squeeze.astype(jnp.float32) * (1.0 / HW)      # (C//2, C)
    w2 = w_excite.astype(jnp.float32)                    # (C,   C//2)
    s = z_sums.reshape(B, C) @ w1.T                      # (B, C//2)
    e = s @ w2.T                                         # (B, C)
    gate = jax.nn.sigmoid(e).astype(dt).reshape(BC, 1)   # cast once to u dtype

    # ---------------- Pass 3: stream U, multiply by the gate -----------------
    mul_cap = max(128, vmem_budget // max(1, 4 * bc_tile * itemsize))
    mul_tile = _pick_tile(HW, quantum=128, cap=min(2048, mul_cap))
    n_mul = HW // mul_tile

    out_flat = pl.pallas_call(
        _gate_mul_kernel,
        out_shape=jax.ShapeDtypeStruct((BC, HW), dt),
        grid=(n_bc, n_mul),
        in_specs=[
            pl.BlockSpec((bc_tile, mul_tile), lambda b, h: (b, h)),
            pl.BlockSpec((bc_tile, 1), lambda b, h: (b, 0)),
        ],
        out_specs=pl.BlockSpec((bc_tile, mul_tile), lambda b, h: (b, h)),
        compiler_params=pltpu.CompilerParams(
            dimension_semantics=("parallel", "parallel")),
        cost_estimate=pl.CostEstimate(
            flops=BC * HW,
            transcendentals=0,
            bytes_accessed=2 * BC * HW * itemsize + BC * itemsize),
    )(u_flat, gate)

    return out_flat.reshape(B, C, H, W)


def _reference(u_nchw, w_squeeze, w_excite):
    # Pure-JAX reference mirroring the PyTorch module (f32 accumulation).
    z = jnp.mean(u_nchw.astype(jnp.float32), axis=(2, 3))       # (B, C)
    z = z @ w_squeeze.astype(jnp.float32).T                     # (B, C//2)
    z = z @ w_excite.astype(jnp.float32).T                      # (B, C)
    gate = jax.nn.sigmoid(z)[:, :, None, None]                  # (B, C, 1, 1)
    return (u_nchw.astype(jnp.float32) * gate).astype(u_nchw.dtype)


if __name__ == "__main__":
    key = jax.random.PRNGKey(0)
    k_u, k_w1, k_w2, k_u2, k_u3 = jax.random.split(key, 5)

    # Primary small test (module-implied shapes).
    B, C, H, W = 2, 4, 16, 16
    u = jax.random.normal(k_u, (B, C, H, W), dtype=jnp.float32)
    # Conv_Squeeze weight (C//2, C, 1, 1) -> (C//2, C); Conv_Excitation -> (C, C//2).
    w_squeeze = jax.random.normal(k_w1, (C // 2, C), dtype=jnp.float32) * 0.1
    w_excite = jax.random.normal(k_w2, (C, C // 2), dtype=jnp.float32) * 0.1

    out = jax.block_until_ready(cse_forward(u, w_squeeze, w_excite))
    ref = _reference(u, w_squeeze, w_excite)
    assert out.shape == (B, C, H, W)
    assert jnp.allclose(out, ref, atol=1e-5, rtol=1e-5)

    # Second test: multi-tile HW grid (several 128-lane tiles).
    B2, C2, H2, W2 = 2, 8, 64, 64
    u2 = jax.random.normal(k_u2, (B2, C2, H2, W2), dtype=jnp.float32)
    w1b = jax.random.normal(k_w1, (C2 // 2, C2), dtype=jnp.float32) * 0.1
    w2b = jax.random.normal(k_w2, (C2, C2 // 2), dtype=jnp.float32) * 0.1
    out2 = jax.block_until_ready(cse_forward(u2, w1b, w2b))
    ref2 = _reference(u2, w1b, w2b)
    assert out2.shape == (B2, C2, H2, W2)
    assert jnp.allclose(out2, ref2, atol=1e-4, rtol=1e-4)

    # Third test: odd shapes (HW not a multiple of 128, B*C not a multiple
    # of 8) to exercise the full-extent fallback blocks.
    B3, C3, H3, W3 = 3, 6, 12, 12
    u3 = jax.random.normal(k_u3, (B3, C3, H3, W3), dtype=jnp.float32)
    w1c = jax.random.normal(k_w1, (C3 // 2, C3), dtype=jnp.float32) * 0.1
    w2c = jax.random.normal(k_w2, (C3, C3 // 2), dtype=jnp.float32) * 0.1
    out3 = jax.block_until_ready(cse_forward(u3, w1c, w2c))
    ref3 = _reference(u3, w1c, w2c)
    assert out3.shape == (B3, C3, H3, W3)
    assert jnp.allclose(out3, ref3, atol=1e-4, rtol=1e-4)

    print("KERNEL_OK")
</pallas_src>

<mosaic_0001>
module attributes {stable_mosaic.version = 11 : i64} {
  func.func @_pool_sum_kernel(%arg0: i32, %arg1: i32, %arg2: memref<8x256xf32, #tpu.memory_space<vmem>>, %arg3: memref<8x1xf32, #tpu.memory_space<vmem>>) attributes {dimension_semantics = [#tpu.dimension_semantics<parallel>, #tpu.dimension_semantics<arbitrary>], iteration_bounds = array<i64: 1, 1>, scalar_prefetch = 0 : i64, scratch_operands = 0 : i64, tpu.core_type = #tpu.core_type<tc>, window_params = [{transform_indices = @transform_0, window_bounds = array<i64: 8, 256>}, {transform_indices = @transform_1, window_bounds = array<i64: 8, 1>}]} {
    %c0_i32 = arith.constant 0 : i32
    %0 = arith.cmpi eq, %arg1, %c0_i32 : i32
    %1 = arith.extui %0 : i1 to i32
    %c0_i32_0 = arith.constant 0 : i32
    %2 = arith.cmpi ne, %1, %c0_i32_0 : i32
    scf.if %2 {
      %cst_6 = arith.constant 0.000000e+00 : f32
      %9 = vector.broadcast %cst_6 : f32 to vector<8x1xf32>
      %c0_7 = arith.constant 0 : index
      %c0_8 = arith.constant 0 : index
      %10 = vector.load %arg3[%c0_7, %c0_8] : memref<8x1xf32, #tpu.memory_space<vmem>>, vector<8x1xf32>
      tpu.vector_store %arg3[%c0_7, %c0_8], %9 {strides = array<i32>} : memref<8x1xf32, #tpu.memory_space<vmem>>, vector<8x1xf32>,
    } else {
    }
    %c0 = arith.constant 0 : index
    %c0_1 = arith.constant 0 : index
    %3 = vector.load %arg3[%c0, %c0_1] : memref<8x1xf32, #tpu.memory_space<vmem>>, vector<8x1xf32>
    %c0_2 = arith.constant 0 : index
    %c0_3 = arith.constant 0 : index
    %4 = vector.load %arg2[%c0_2, %c0_3] : memref<8x256xf32, #tpu.memory_space<vmem>>, vector<8x256xf32>
    %cst = arith.constant dense<0.000000e+00> : vector<8xf32>
    %5 = vector.multi_reduction <add>, %4, %cst [1] : vector<8x256xf32> to vector<8xf32>
    %6 = vector.shape_cast %5 : vector<8xf32> to vector<8x1xf32>
    %7 = arith.addf %3, %6 : vector<8x1xf32>
    %c0_4 = arith.constant 0 : index
    %c0_5 = arith.constant 0 : index
    %8 = vector.load %arg3[%c0_4, %c0_5] : memref<8x1xf32, #tpu.memory_space<vmem>>, vector<8x1xf32>
    tpu.vector_store %arg3[%c0_4, %c0_5], %7 {strides = array<i32>} : memref<8x1xf32, #tpu.memory_space<vmem>>, vector<8x1xf32>,
    return
  }
  func.func @transform_0(%arg0: i32, %arg1: i32) -> (i32, i32) {
    %c0_i32 = arith.constant 0 : i32
    return %arg0, %arg1 : i32, i32
  }
  func.func @transform_1(%arg0: i32, %arg1: i32) -> (i32, i32) {
    %c0_i32 = arith.constant 0 : i32
    %c0_i32_0 = arith.constant 0 : i32
    return %arg0, %c0_i32 : i32, i32
  }
}

module attributes {stable_mosaic.version = 11 : i64} {
  func.func @_gate_mul_kernel(%arg0: i32, %arg1: i32, %arg2: memref<8x256xf32, #tpu.memory_space<vmem>>, %arg3: memref<8x1xf32, #tpu.memory_space<vmem>>, %arg4: memref<8x256xf32, #tpu.memory_space<vmem>>) attributes {dimension_semantics = [#tpu.dimension_semantics<parallel>, #tpu.dimension_semantics<parallel>], iteration_bounds = array<i64: 1, 1>, scalar_prefetch = 0 : i64, scratch_operands = 0 : i64, tpu.core_type = #tpu.core_type<tc>, window_params = [{transform_indices = @transform_0, window_bounds = array<i64: 8, 256>}, {transform_indices = @transform_1, window_bounds = array<i64: 8, 1>}, {transform_indices = @transform_2, window_bounds = array<i64: 8, 256>}]} {
    %c0 = arith.constant 0 : index
    %c0_0 = arith.constant 0 : index
    %0 = vector.load %arg2[%c0, %c0_0] : memref<8x256xf32, #tpu.memory_space<vmem>>, vector<8x256xf32>
    %c0_1 = arith.constant 0 : index
    %c0_2 = arith.constant 0 : index
    %1 = vector.load %arg3[%c0_1, %c0_2] : memref<8x1xf32, #tpu.memory_space<vmem>>, vector<8x1xf32>
    %2 = vector.broadcast %1 : vector<8x1xf32> to vector<8x256xf32>
    %3 = arith.mulf %0, %2 : vector<8x256xf32>
    %c0_3 = arith.constant 0 : index
    %c0_4 = arith.constant 0 : index
    %4 = vector.load %arg4[%c0_3, %c0_4] : memref<8x256xf32, #tpu.memory_space<vmem>>, vector<8x256xf32>
    tpu.vector_store %arg4[%c0_3, %c0_4], %3 {strides = array<i32>} : memref<8x256xf32, #tpu.memory_space<vmem>>, vector<8x256xf32>,
    return
  }
  func.func @transform_0(%arg0: i32, %arg1: i32) -> (i32, i32) {
    %c0_i32 = arith.constant 0 : i32
    return %arg0, %arg1 : i32, i32
  }
  func.func @transform_1(%arg0: i32, %arg1: i32) -> (i32, i32) {
    %c0_i32 = arith.constant 0 : i32
    %c0_i32_0 = arith.constant 0 : i32
    return %arg0, %c0_i32 : i32, i32
  }
  func.func @transform_2(%arg0: i32, %arg1: i32) -> (i32, i32) {
    %c0_i32 = arith.constant 0 : i32
    return %arg0, %arg1 : i32, i32
  }
}

</mosaic_0001>

<llo_original>
// kernel: cse_forward.2
$region0: #{cse_forward.2}
  #allocation0 [shape = 'u32[]', space=smem, size = 0x4, offset = 0x4, fixed_abs, tag = 'smem constant byte address 0x4 - core index']
  #allocation1 [shape = 'u32[144,128]{1,0:T(1,128)}', space=vmem, size = 0x12000, scoped, tag = 'internal scratch']
  %s0 = inlined_call_operand.vmem [shape: f32[8,256], index: 0, kind: input, shape index: {}]
  %s1 = inlined_call_operand.vmem [shape: f32[8,1], index: 1, kind: output, shape index: {}]
  %s2 = sld [smem:[#allocation0]]
  $region18: #{cse_forward.2} parent=0
    _
  %s4 = ssub.s32 1, %s2
  %s5 = scalar_select 0, %s4, %s2
  // Predicated region
  $region2: #{cse_forward.2} parent=0 // pred_check
    _
  $region3: #{cse_forward.2} parent=0 // pred_check_branch
    %7 = sbr.rel (0) target = $region5
  $region4: #{cse_forward.2} parent=0 // pred_region
    _
  $region5: #{cse_forward.2} parent=0 // pred_fallthru
    _
  %p8 = scmp.eq.s32.totalorder 0, 0
  // Predicated region
  $region6: #{cse_forward.2} parent=0 // pred_check
    %p9 = pneg %p8
  $region7: #{cse_forward.2} parent=0 // pred_check_branch
    %11 = sbr.rel (%p9) target = $region9
  $region8: #{cse_forward.2} parent=0 // pred_region
    %vm12 = vcmask 7168
    %13 = vst.msk [vmem:[%s1] sm:$0xff] %vm12, 0.0
  $region9: #{cse_forward.2} parent=0 // pred_fallthru
    _
  %v14 = vld [vmem:[%s1] sm:$0xff]
  %v15 = vld [vmem:[%s0] sm:$0xff]
  %v16 = vld [vmem:[%s0 + $0x8] sm:$0xff]
  %v17 = vadd.f32 %v15, %v16
  %18 = vadd.xlane.f32.xlu0 %v17
  %v19 = vpop.xlane.xlu0 %18
  %v20 = vadd.f32 %v14, %v19
  %vm21 = vcmask 7168
  %22 = vst.msk [vmem:[%s1] sm:$0xff] %vm21, %v20
  // Predicated region
  $region10: #{cse_forward.2} parent=0 // pred_check
    _
  $region11: #{cse_forward.2} parent=0 // pred_check_branch
    %24 = sbr.rel (0) target = $region13
  $region12: #{cse_forward.2} parent=0 // pred_region
    _
  $region13: #{cse_forward.2} parent=0 // pred_fallthru
    _
  // Predicated region
  $region14: #{cse_forward.2} parent=0 // pred_check
    _
  $region15: #{cse_forward.2} parent=0 // pred_check_branch
    %26 = sbr.rel (0) target = $region17
  $region16: #{cse_forward.2} parent=0 // pred_region
    _
  $region17: #{cse_forward.2} parent=0 // pred_fallthru
    _

// kernel: cse_forward.3
$region0: #{cse_forward.3}
  #allocation0 [shape = 'u32[]', space=smem, size = 0x4, offset = 0x4, fixed_abs, tag = 'smem constant byte address 0x4 - core index']
  #allocation1 [shape = 'u32[144,128]{1,0:T(1,128)}', space=vmem, size = 0x12000, scoped, tag = 'internal scratch']
  %s0 = inlined_call_operand.vmem [shape: f32[8,256], index: 0, kind: input, shape index: {}]
  %s1 = inlined_call_operand.vmem [shape: f32[8,1], index: 1, kind: input, shape index: {}]
  %s2 = inlined_call_operand.vmem [shape: f32[8,256], index: 2, kind: output, shape index: {}]
  %s3 = sld [smem:[#allocation0]]
  $region18: #{cse_forward.3} parent=0
    _
  %s5 = ssub.s32 1, %s3
  %s6 = scalar_select 0, %s5, %s3
  // Predicated region
  $region2: #{cse_forward.3} parent=0 // pred_check
    _
  $region3: #{cse_forward.3} parent=0 // pred_check_branch
    %8 = sbr.rel (0) target = $region5
  $region4: #{cse_forward.3} parent=0 // pred_region
    _
  $region5: #{cse_forward.3} parent=0 // pred_fallthru
    _
  // Predicated region
  $region6: #{cse_forward.3} parent=0 // pred_check
    _
  $region7: #{cse_forward.3} parent=0 // pred_check_branch
    %10 = sbr.rel (0) target = $region9
  $region8: #{cse_forward.3} parent=0 // pred_region
    _
  $region9: #{cse_forward.3} parent=0 // pred_fallthru
    _
  %v11 = vld [vmem:[%s0] sm:$0xff]
  %v12 = vld [vmem:[%s0 + $0x8] sm:$0xff]
  %v13 = vld [vmem:[%s1] sm:$0xff]
  %15 = vset.pattern.permute.xlu0 0
  %16 = vperm.xlu0 %15, %v13
  %v17 = vpop.permute.xlu0 %16
  %v19 = vmul.f32 %v11, %v17
  %v20 = vmul.f32 %v12, %v17
  %21 = vst [vmem:[%s2] sm:$0xff] %v19
  %22 = vst [vmem:[%s2 + $0x8] sm:$0xff] %v20
  // Predicated region
  $region10: #{cse_forward.3} parent=0 // pred_check
    _
  $region11: #{cse_forward.3} parent=0 // pred_check_branch
    %24 = sbr.rel (0) target = $region13
  $region12: #{cse_forward.3} parent=0 // pred_region
    _
  $region13: #{cse_forward.3} parent=0 // pred_fallthru
    _
  // Predicated region
  $region14: #{cse_forward.3} parent=0 // pred_check
    _
  $region15: #{cse_forward.3} parent=0 // pred_check_branch
    %26 = sbr.rel (0) target = $region17
  $region16: #{cse_forward.3} parent=0 // pred_region
    _
  $region17: #{cse_forward.3} parent=0 // pred_fallthru
    _

</llo_original>
